<compile_context>
chip_gen: v6e
topology: v6e:2x2x1
jax: 0.10.0
libtpu: 0.0.40
codegen_flags: <defaults>
</compile_context>

<pallas_src>
import jax
import jax.numpy as jnp
from jax.experimental import pallas as pl
from jax.experimental.pallas import tpu as pltpu


# ----------------------------- device-aware budgets ---------------------------

def _device_kind() -> str:
    try:
        return jax.devices()[0].device_kind.lower()
    except Exception:
        return ""


def _vmem_limit_bytes() -> int:
    kind = _device_kind()
    if "v7" in kind:                      # 64 MiB physical VMEM
        return 40 * 1024 * 1024
    if "v5" in kind or "v6" in kind:      # 128 MiB physical VMEM
        return 64 * 1024 * 1024
    return 32 * 1024 * 1024               # unknown / older: previously-validated


def _tile_budget_bytes() -> int:
    kind = _device_kind()
    if "v7" in kind:
        return 3 * 1024 * 1024
    if "v5" in kind or "v6" in kind:
        return 8 * 1024 * 1024
    return 2 * 1024 * 1024


def _round_up(x: int, m: int) -> int:
    return -(-x // m) * m


# ----------------------------- tile pickers -----------------------------------

def _pick_tile_spatial(c: int, s: int, itemsize: int, budget: int) -> int:
    """Largest multiple-of-128 flattened-spatial tile with C*tile*itemsize <= budget."""
    max_elems = max(budget // max(c * itemsize, 1), 128)
    tile = max((max_elems // 128) * 128, 128)
    return min(tile, _round_up(s, 128))


def _pick_tile_h(c: int, h: int, w: int, itemsize: int, budget: int) -> int:
    """Largest multiple-of-8 divisor of H whose (lane-padded) block fits the budget."""
    w_pad = _round_up(w, 128)                    # VMEM pads the lane dim to 128
    for t in range((h // 8) * 8, 0, -8):
        if h % t == 0 and c * t * w_pad * itemsize <= budget:
            return t
    return h                                      # only other layout-legal choice


# ----------------------------- kernels ----------------------------------------

def _conv1x1_kernel(x_ref, w_ref, b_ref, o_ref):
    # x_ref: (C, tile_s) VMEM ; w_ref: (C, 1) VMEM ; b_ref: (1,) SMEM ; o_ref: (1, tile_s)
    prod = x_ref[...].astype(jnp.float32) * w_ref[...]          # lane-broadcast of column
    acc = jnp.sum(prod, axis=0, keepdims=True)                  # (1, tile_s) f32
    o_ref[...] = (acc + b_ref[0]).astype(o_ref.dtype)


def _fused_score_resize_kernel(x_ref, w_ref, b_ref, lht_ref, lwt_ref, o_ref, acc_ref):
    # x_ref:   (C, tile_h, W)   per-(n, h-tile) input block
    # w_ref:   (C, 1) VMEM      conv weights (column)
    # b_ref:   (1,)  SMEM       conv bias
    # lht_ref: (tile_h, Hout)   Lh^T slab for this h-tile (align_corners=True)
    # lwt_ref: (W, Wout)        Lw^T (full, small)
    # o_ref:   (Hout, Wout)     output block (resident across h-tiles)
    # acc_ref: (Hout, W) f32    running Lh @ (conv(x)+b) accumulator
    ht = pl.program_id(1)

    @pl.when(ht == 0)
    def _():
        acc_ref[...] = jnp.zeros_like(acc_ref)

    # 1x1 conv on this h-tile: f32 accumulation on the VPU.
    prod = x_ref[...].astype(jnp.float32) * w_ref[...][:, :, None]   # (C, tile_h, W)
    y_tile = jnp.sum(prod, axis=0) + b_ref[0]                        # (tile_h, W) f32

    # Row-interp contribution of this tile: acc += Lh[:, rows] @ y_tile (MXU),
    # overlapped with the streaming DMA instead of a serial epilogue.
    acc_ref[...] += jnp.einsum('hk,hw->kw', lht_ref[...], y_tile,
                               preferred_element_type=jnp.float32)

    @pl.when(ht == pl.num_programs(1) - 1)
    def _():
        o_ref[...] = jnp.dot(acc_ref[...], lwt_ref[...],
                             preferred_element_type=jnp.float32).astype(o_ref.dtype)


# ----------------------------- wrappers ----------------------------------------

def _bilinear_matrix(in_size: int, out_size: int) -> jnp.ndarray:
    """(out_size, in_size) matrix for 1-D linear interp, align_corners=True."""
    if out_size == 1:
        src = jnp.zeros((1,), jnp.float32)
    else:
        src = jnp.arange(out_size, dtype=jnp.float32) * ((in_size - 1) / (out_size - 1))
    if in_size == 1:
        i0 = jnp.zeros((out_size,), jnp.int32)
    else:
        i0 = jnp.clip(jnp.floor(src).astype(jnp.int32), 0, in_size - 2)
    frac = src - i0.astype(jnp.float32)
    rows = jnp.arange(out_size)
    m = jnp.zeros((out_size, in_size), jnp.float32)
    m = m.at[rows, i0].add(1.0 - frac)
    m = m.at[rows, jnp.clip(i0 + 1, 0, in_size - 1)].add(frac)
    return m


def score_conv1x1(x_nchw: jnp.ndarray, weight: jnp.ndarray, bias: jnp.ndarray):
    """1x1 conv (k -> 1 channel), NCHW in / NCHW out, no resize. Lane-dense tiling."""
    n, c, h, w = x_nchw.shape
    s = h * w
    w_col = weight.reshape(c, 1).astype(jnp.float32)      # (C, 1) -> VMEM
    b_vec = bias.reshape(1).astype(jnp.float32)           # (1,)   -> SMEM
    x_flat = x_nchw.reshape(n, c, s)                      # free reshape (contiguous NCHW)

    tile_s = _pick_tile_spatial(c, s, x_nchw.dtype.itemsize, _tile_budget_bytes())
    grid = (n, pl.cdiv(s, tile_s))                        # ragged last tile is masked

    out_flat = pl.pallas_call(
        _conv1x1_kernel,
        out_shape=jax.ShapeDtypeStruct((n, 1, s), x_nchw.dtype),
        grid=grid,
        in_specs=[
            pl.BlockSpec((None, c, tile_s), lambda i, j: (i, 0, j)),
            pl.BlockSpec((c, 1), lambda i, j: (0, 0)),
            pl.BlockSpec(memory_space=pltpu.MemorySpace.SMEM),
        ],
        out_specs=pl.BlockSpec((None, 1, tile_s), lambda i, j: (i, 0, j)),
        compiler_params=pltpu.CompilerParams(
            dimension_semantics=("parallel", "parallel"),
            vmem_limit_bytes=_vmem_limit_bytes(),
        ),
    )(x_flat, w_col, b_vec)
    return out_flat.reshape(n, 1, h, w)


def score_layer_fused(x_nchw: jnp.ndarray, weight: jnp.ndarray, bias: jnp.ndarray,
                      out_hw):
    """Fused 1x1 conv + bilinear (align_corners=True) resize in one pallas_call."""
    n, c, h, w = x_nchw.shape
    h_out, w_out = int(out_hw[0]), int(out_hw[1])
    w_col = weight.reshape(c, 1).astype(jnp.float32)
    b_vec = bias.reshape(1).astype(jnp.float32)
    lh_t = _bilinear_matrix(h, h_out).T                   # (H, Hout), streamed in row slabs
    lwt = _bilinear_matrix(w, w_out).T                    # (W, Wout)
    tile_h = _pick_tile_h(c, h, w, x_nchw.dtype.itemsize, _tile_budget_bytes())

    return pl.pallas_call(
        _fused_score_resize_kernel,
        out_shape=jax.ShapeDtypeStruct((n, 1, h_out, w_out), x_nchw.dtype),
        grid=(n, h // tile_h),
        in_specs=[
            pl.BlockSpec((None, c, tile_h, w), lambda i, j: (i, 0, j, 0)),
            pl.BlockSpec((c, 1), lambda i, j: (0, 0)),
            pl.BlockSpec(memory_space=pltpu.MemorySpace.SMEM),
            pl.BlockSpec((tile_h, h_out), lambda i, j: (j, 0)),
            pl.BlockSpec((w, w_out), lambda i, j: (0, 0)),
        ],
        out_specs=pl.BlockSpec((None, None, h_out, w_out), lambda i, j: (i, 0, 0, 0)),
        scratch_shapes=[pltpu.VMEM((h_out, w), jnp.float32)],
        compiler_params=pltpu.CompilerParams(
            # h-tile axis carries the scratch accumulation -> "arbitrary"
            dimension_semantics=("parallel", "arbitrary"),
            vmem_limit_bytes=_vmem_limit_bytes(),
        ),
    )(x_nchw, w_col, b_vec, lh_t, lwt)


def score_layer(x_nchw, weight, bias, x_size=None):
    """Forward pass of ScoreLayer. x_size mirrors the PyTorch arg (full NCHW size)."""
    if x_size is None:
        return score_conv1x1(x_nchw, weight, bias)
    return score_layer_fused(x_nchw, weight, bias, (x_size[2], x_size[3]))


# ----------------------------- demo --------------------------------------------

if __name__ == "__main__":
    k = 4            # input channels of ScoreLayer
    N, H, W = 2, 16, 16
    out_size = (N, 1, 32, 32)   # emulates passing x_size of the original image

    key = jax.random.PRNGKey(0)
    kx, kw, kb = jax.random.split(key, 3)
    x = jax.random.normal(kx, (N, k, H, W), dtype=jnp.float32)
    # Conv2d(k, 1, 1): weight (1, k, 1, 1), bias (1,)
    weight = jax.random.normal(kw, (1, k, 1, 1), dtype=jnp.float32) * 0.1
    bias = jax.random.normal(kb, (1,), dtype=jnp.float32) * 0.1

    # fused conv + resize path
    out = jax.block_until_ready(score_layer(x, weight, bias, x_size=out_size))
    assert out.shape == (N, 1, out_size[2], out_size[3]), out.shape

    # conv-only path
    out_small = jax.block_until_ready(score_layer(x, weight, bias, x_size=None))
    assert out_small.shape == (N, 1, H, W), out_small.shape

    # lightweight reference check (pure JAX)
    ref_conv = (x * weight.reshape(1, k, 1, 1)).sum(axis=1, keepdims=True) \
        + bias.reshape(1, 1, 1, 1)
    assert jnp.allclose(out_small, ref_conv, atol=1e-3, rtol=1e-3)

    lh_ref = _bilinear_matrix(H, out_size[2])
    lwt_ref = _bilinear_matrix(W, out_size[3]).T
    ref_resized = jnp.einsum("oh,nhw,wp->nop", lh_ref, ref_conv[:, 0], lwt_ref)[:, None]
    assert jnp.allclose(out, ref_resized, atol=1e-3, rtol=1e-3)

    print("KERNEL_OK")
</pallas_src>

<mosaic_0001>
module attributes {stable_mosaic.version = 11 : i64} {
  func.func @_fused_score_resize_kernel(%arg0: i32, %arg1: i32, %arg2: memref<1x4x16x16xf32, #tpu.memory_space<vmem>>, %arg3: memref<4x1xf32, #tpu.memory_space<vmem>>, %arg4: memref<1xf32, #tpu.memory_space<smem>>, %arg5: memref<16x32xf32, #tpu.memory_space<vmem>>, %arg6: memref<16x32xf32, #tpu.memory_space<vmem>>, %arg7: memref<1x1x32x32xf32, #tpu.memory_space<vmem>>, %arg8: memref<32x16xf32, #tpu.memory_space<vmem>>) attributes {dimension_semantics = [#tpu.dimension_semantics<parallel>, #tpu.dimension_semantics<arbitrary>], iteration_bounds = array<i64: 2, 1>, scalar_prefetch = 0 : i64, scratch_operands = 1 : i64, tpu.core_type = #tpu.core_type<tc>, window_params = [{transform_indices = @transform_0, window_bounds = array<i64: 1, 4, 16, 16>}, {pipeline_mode = #tpu.pipeline_mode<synchronous>, transform_indices = @transform_1, window_bounds = array<i64: 4, 1>}, {transform_indices = @transform_2, window_bounds = array<i64: 1>}, {transform_indices = @transform_3, window_bounds = array<i64: 16, 32>}, {pipeline_mode = #tpu.pipeline_mode<synchronous>, transform_indices = @transform_4, window_bounds = array<i64: 16, 32>}, {transform_indices = @transform_5, window_bounds = array<i64: 1, 1, 32, 32>}]} {
    %c0_i32 = arith.constant 0 : i32
    %0 = arith.cmpi eq, %arg1, %c0_i32 : i32
    %1 = arith.extui %0 : i1 to i32
    %c0_i32_0 = arith.constant 0 : i32
    %2 = arith.cmpi ne, %1, %c0_i32_0 : i32
    scf.if %2 {
      %cst_16 = arith.constant 0.000000e+00 : f32
      %21 = vector.broadcast %cst_16 : f32 to vector<32x16xf32>
      %c0_17 = arith.constant 0 : index
      %c0_18 = arith.constant 0 : index
      %22 = vector.load %arg8[%c0_17, %c0_18] : memref<32x16xf32, #tpu.memory_space<vmem>>, vector<32x16xf32>
      tpu.vector_store %arg8[%c0_17, %c0_18], %21 {strides = array<i32>} : memref<32x16xf32, #tpu.memory_space<vmem>>, vector<32x16xf32>,
    } else {
    }
    %c0 = arith.constant 0 : index
    %c0_1 = arith.constant 0 : index
    %c0_2 = arith.constant 0 : index
    %c0_3 = arith.constant 0 : index
    %3 = vector.load %arg2[%c0, %c0_1, %c0_2, %c0_3] : memref<1x4x16x16xf32, #tpu.memory_space<vmem>>, vector<1x4x16x16xf32>
    %4 = vector.shape_cast %3 : vector<1x4x16x16xf32> to vector<4x16x16xf32>
    %c0_4 = arith.constant 0 : index
    %c0_5 = arith.constant 0 : index
    %5 = vector.load %arg3[%c0_4, %c0_5] : memref<4x1xf32, #tpu.memory_space<vmem>>, vector<4x1xf32>
    %6 = vector.shape_cast %5 : vector<4x1xf32> to vector<4x1x1xf32>
    %7 = vector.broadcast %6 : vector<4x1x1xf32> to vector<4x16x16xf32>
    %8 = arith.mulf %4, %7 : vector<4x16x16xf32>
    %cst = arith.constant dense<0.000000e+00> : vector<16x16xf32>
    %9 = vector.multi_reduction <add>, %8, %cst [0] : vector<4x16x16xf32> to vector<16x16xf32>
    %c0_6 = arith.constant 0 : index
    %10 = memref.load %arg4[%c0_6] : memref<1xf32, #tpu.memory_space<smem>>
    %11 = vector.broadcast %10 : f32 to vector<16x16xf32>
    %12 = arith.addf %9, %11 : vector<16x16xf32>
    %c0_7 = arith.constant 0 : index
    %c0_8 = arith.constant 0 : index
    %13 = vector.load %arg8[%c0_7, %c0_8] : memref<32x16xf32, #tpu.memory_space<vmem>>, vector<32x16xf32>
    %c0_9 = arith.constant 0 : index
    %c0_10 = arith.constant 0 : index
    %14 = vector.load %arg5[%c0_9, %c0_10] : memref<16x32xf32, #tpu.memory_space<vmem>>, vector<16x32xf32>
    "tpu.trace_start"() <{level = 10 : i32, message = "hk,hw->kw"}> : () -> ()
    %cst_11 = arith.constant dense<0.000000e+00> : vector<32x16xf32>
    %15 = tpu.matmul %14, %12, %cst_11 {dimension_numbers = #tpu.dot_dimension_numbers<[0], [0], [1], [1], [0, 1, 1, 1], [], []>} : vector<16x32xf32>, vector<16x16xf32>, vector<32x16xf32> -> vector<32x16xf32>
    "tpu.trace_stop"() : () -> ()
    %16 = arith.addf %13, %15 : vector<32x16xf32>
    %c0_12 = arith.constant 0 : index
    %c0_13 = arith.constant 0 : index
    %17 = vector.load %arg8[%c0_12, %c0_13] : memref<32x16xf32, #tpu.memory_space<vmem>>, vector<32x16xf32>
    tpu.vector_store %arg8[%c0_12, %c0_13], %16 {strides = array<i32>} : memref<32x16xf32, #tpu.memory_space<vmem>>, vector<32x16xf32>,
    %c0_i32_14 = arith.constant 0 : i32
    %18 = arith.cmpi eq, %arg1, %c0_i32_14 : i32
    %19 = arith.extui %18 : i1 to i32
    %c0_i32_15 = arith.constant 0 : i32
    %20 = arith.cmpi ne, %19, %c0_i32_15 : i32
    scf.if %20 {
      %c0_16 = arith.constant 0 : index
      %c0_17 = arith.constant 0 : index
      %21 = vector.load %arg8[%c0_16, %c0_17] : memref<32x16xf32, #tpu.memory_space<vmem>>, vector<32x16xf32>
      %c0_18 = arith.constant 0 : index
      %c0_19 = arith.constant 0 : index
      %22 = vector.load %arg6[%c0_18, %c0_19] : memref<16x32xf32, #tpu.memory_space<vmem>>, vector<16x32xf32>
      %cst_20 = arith.constant dense<0.000000e+00> : vector<32x32xf32>
      %23 = tpu.matmul %21, %22, %cst_20 {dimension_numbers = #tpu.dot_dimension_numbers<[1], [0], [0], [1], [0, 0, 1, 1], [], []>} : vector<32x16xf32>, vector<16x32xf32>, vector<32x32xf32> -> vector<32x32xf32>
      %c0_21 = arith.constant 0 : index
      %c0_22 = arith.constant 0 : index
      %c0_23 = arith.constant 0 : index
      %c0_24 = arith.constant 0 : index
      %24 = vector.load %arg7[%c0_21, %c0_22, %c0_23, %c0_24] : memref<1x1x32x32xf32, #tpu.memory_space<vmem>>, vector<1x1x32x32xf32>
      %25 = vector.shape_cast %24 : vector<1x1x32x32xf32> to vector<32x32xf32>
      %26 = vector.shape_cast %23 : vector<32x32xf32> to vector<1x1x32x32xf32>
      tpu.vector_store %arg7[%c0_21, %c0_22, %c0_23, %c0_24], %26 {strides = array<i32>} : memref<1x1x32x32xf32, #tpu.memory_space<vmem>>, vector<1x1x32x32xf32>,
    } else {
    }
    return
  }
  func.func @transform_0(%arg0: i32, %arg1: i32) -> (i32, i32, i32, i32) {
    %c0_i32 = arith.constant 0 : i32
    %c0_i32_0 = arith.constant 0 : i32
    %c0_i32_1 = arith.constant 0 : i32
    return %arg0, %c0_i32, %arg1, %c0_i32_0 : i32, i32, i32, i32
  }
  func.func @transform_1(%arg0: i32, %arg1: i32) -> (i32, i32) {
    %c0_i32 = arith.constant 0 : i32
    %c0_i32_0 = arith.constant 0 : i32
    %c0_i32_1 = arith.constant 0 : i32
    return %c0_i32, %c0_i32_0 : i32, i32
  }
  func.func @transform_2(%arg0: i32, %arg1: i32) -> i32 {
    %c0_i32 = arith.constant 0 : i32
    %c0_i32_0 = arith.constant 0 : i32
    return %c0_i32 : i32
  }
  func.func @transform_3(%arg0: i32, %arg1: i32) -> (i32, i32) {
    %c0_i32 = arith.constant 0 : i32
    %c0_i32_0 = arith.constant 0 : i32
    return %arg1, %c0_i32 : i32, i32
  }
  func.func @transform_4(%arg0: i32, %arg1: i32) -> (i32, i32) {
    %c0_i32 = arith.constant 0 : i32
    %c0_i32_0 = arith.constant 0 : i32
    %c0_i32_1 = arith.constant 0 : i32
    return %c0_i32, %c0_i32_0 : i32, i32
  }
  func.func @transform_5(%arg0: i32, %arg1: i32) -> (i32, i32, i32, i32) {
    %c0_i32 = arith.constant 0 : i32
    %c0_i32_0 = arith.constant 0 : i32
    %c0_i32_1 = arith.constant 0 : i32
    %c0_i32_2 = arith.constant 0 : i32
    return %arg0, %c0_i32, %c0_i32_0, %c0_i32_1 : i32, i32, i32, i32
  }
}

</mosaic_0001>

<llo_original>
// kernel: tpu_custom_call.1
$region0: #{tpu_custom_call.1}
  #allocation0 [shape = 'u32[]', space=smem, size = 0x4, offset = 0x4, fixed_abs, tag = 'smem constant byte address 0x4 - core index']
  #allocation1 [shape = 'u32[144,128]{1,0:T(1,128)}', space=vmem, size = 0x12000, scoped, tag = 'internal scratch']
  #allocation2 [shape = 'f32[32,16]{1,0:T(8,128)}', space=vmem, size = 0x4000, scoped, tag = 'scratch operand']
  #allocation3 [shape = 'f32[1]{0:T(128)S(6)}', space=smem, size = 0x200, scoped, tag = 'scoped memory for tpu_custom_call.1']
  %s0 = inlined_call_operand.hbm [shape: f32[2,4,16,16], index: 0, kind: input, shape index: {}]
  %s1 = inlined_call_operand.vmem [shape: f32[4,1], index: 1, kind: input, shape index: {}]
  %s2 = inlined_call_operand.<no memory space> [shape: f32[1], index: 2, kind: input, shape index: {}]
  %s3 = inlined_call_operand.hbm [shape: f32[16,32], index: 3, kind: input, shape index: {}]
  %s4 = inlined_call_operand.hbm [shape: f32[16,32], index: 4, kind: input, shape index: {}]
  %s5 = inlined_call_operand.hbm [shape: f32[2,1,32,32], index: 5, kind: output, shape index: {}]
  %s6 = sld [smem:[#allocation0]]
  $region73: #{tpu_custom_call.1} parent=0
    _
  %s8 = ssub.s32 1, %s6
  %s9 = scalar_select 0, %s8, %s6
  %10 = sst [smem:[#allocation3]] %s2
  $region1: #{tpu_custom_call.1} parent=0
    #allocation4 [shape = 'u8[65536]{0}', space=vmem, size = 0x10000, scoped, tag = 'input window, operand 0']
    #allocation5 [shape = 's32[2]{0}', space=sflag, size = 0x8, scoped, tag = 'scoped memory for tpu_custom_call.1']
    #allocation6 [shape = 's32[2]{0}', space=sflag, size = 0x8, scoped, tag = 'scoped memory for tpu_custom_call.1']
    #allocation7 [shape = 'u8[8192]{0}', space=vmem, size = 0x2000, scoped, tag = 'input window, operand 3, single buffered']
    #allocation8 [shape = 's32[1]{0}', space=sflag, size = 0x4, scoped, tag = 'scoped memory for tpu_custom_call.1']
    #allocation9 [shape = 'u8[8192]{0}', space=vmem, size = 0x2000, scoped, tag = 'input window, operand 4, single buffered']
    #allocation10 [shape = 'u8[32768]{0}', space=vmem, size = 0x8000, scoped, tag = 'output window, operand 0']
    %11 = vsyncpa [#allocation5], 0
    %s12 = scalar_lea.sflag [#allocation5], 1
    %13 = vsyncpa %s12, 0
    %14 = vsyncpa [#allocation8], 0
    %15 = vsyncpa [#allocation6], 0
    %s16 = scalar_lea.sflag [#allocation6], 1
    %17 = vsyncpa %s16, 0
    loop: start=0, step=1, limit=4
    $region2: #{tpu_custom_call.1} parent=1 // loop_pre_header
      _
    $region3: #{tpu_custom_call.1} parent=1 // loop_header
      %s19 = sphi 0, %s23
      %p20 = scmp.ge.s32.totalorder %s19, 4
      %s26 = sphi 0, %s38
      %s27 = sphi 0, %s34
      %s28 = sphi 0, %s26
      %s29 = sphi 0, %s27
      %s30 = sphi 0, %s28
      %s31 = sphi 0, %s29
      %s43 = sphi 0, %s45
      %s46 = sphi 0, %s43
      %s47 = sphi 0, %s46
      %s63 = sphi 0, %s47
      %s67 = sphi 0, %s67
      %s69 = sphi 0, %s67
      %s70 = sphi 0, %s69
      %s84 = sphi 0, %s70
      %s88 = sphi 0, %s88
      %s90 = sphi 0, %s88
      %s91 = sphi 0, %s90
      %s105 = sphi 0, %s91
      %s111 = sphi 0, %s113
      %s114 = sphi 0, %s111
      %s115 = sphi 0, %s114
      %s131 = sphi 0, %s115
      %s135 = sphi 0, %s135
      %s137 = sphi 0, %s135
      %s138 = sphi 0, %s137
      %s152 = sphi 0, %s138
      %s158 = sphi 0, %s160
      %s161 = sphi 0, %s158
      %s162 = sphi 0, %s161
      %s178 = sphi 0, %s162
    $region4: #{tpu_custom_call.1} parent=1 // loop_header_branch
      %22 = sbr.rel (%p20) target = $region8
    $region5: #{tpu_custom_call.1} parent=1 // loop_body
      %s24 = ssub.s32 %s19, 1
      %s25 = ssub.s32 %s19, 2
      %s32 = sadd.s32 1, %s27
      %p33 = scmp.ge.s32.totalorder %s32, 1
      %s34 = scalar_select %p33, 0, %s32
      %s35 = sadd.s32 1, %s26
      %s36 = scalar_select %p33, %s35, %s26
      %p37 = scmp.ge.s32.totalorder %s36, 2
      %s38 = scalar_select %p37, 0, %s36
      %s39 = ssub.s32 %s26, %s38
      %s40 = ssub.s32 %s27, %s34
      %s41 = sor.u32 %s39, %s40
      %p42 = scmp.eq.s32.totalorder %s41, 0
      %s44 = sadd.s32 %s43, 1
      %s45 = scalar_select %p42, %s43, %s44
      %p48 = pneg %p42
      %p49 = scmp.eq.s32.totalorder %s19, 1
      %p50 = por %p48, %p49
      %p51 = scmp.ne.s32.totalorder %s43, %s46
      %p52 = scmp.eq.s32.totalorder %s19, 0
      %p53 = por %p51, %p52
      %p54 = scmp.ne.s32.totalorder %s43, %s46
      %p55 = scmp.eq.s32.totalorder %s24, 1
      %p56 = por %p54, %p55
      %p57 = scmp.ne.s32.totalorder %s46, %s47
      %p58 = scmp.eq.s32.totalorder %s24, 0
      %p59 = por %p57, %p58
      %p60 = scmp.ne.s32.totalorder %s46, %s47
      %p61 = scmp.eq.s32.totalorder %s25, 1
      %p62 = por %p60, %p61
      %p64 = scmp.ne.s32.totalorder %s47, %s63
      %p65 = scmp.eq.s32.totalorder %s25, 0
      %p66 = por %p64, %p65
      %s68 = sadd.s32 %s67, 1
      %p71 = scmp.eq.s32.totalorder %s19, 1
      %p72 = scmp.ne.s32.totalorder %s67, %s69
      %p73 = scmp.eq.s32.totalorder %s19, 0
      %p74 = por %p72, %p73
      %p75 = scmp.ne.s32.totalorder %s67, %s69
      %p76 = scmp.eq.s32.totalorder %s24, 1
      %p77 = por %p75, %p76
      %p78 = scmp.ne.s32.totalorder %s69, %s70
      %p79 = scmp.eq.s32.totalorder %s24, 0
      %p80 = por %p78, %p79
      %p81 = scmp.ne.s32.totalorder %s69, %s70
      %p82 = scmp.eq.s32.totalorder %s25, 1
      %p83 = por %p81, %p82
      %p85 = scmp.ne.s32.totalorder %s70, %s84
      %p86 = scmp.eq.s32.totalorder %s25, 0
      %p87 = por %p85, %p86
      %s89 = sadd.s32 %s88, 1
      %p92 = scmp.eq.s32.totalorder %s19, 1
      %p93 = scmp.ne.s32.totalorder %s88, %s90
      %p94 = scmp.eq.s32.totalorder %s19, 0
      %p95 = por %p93, %p94
      %p96 = scmp.ne.s32.totalorder %s88, %s90
      %p97 = scmp.eq.s32.totalorder %s24, 1
      %p98 = por %p96, %p97
      %p99 = scmp.ne.s32.totalorder %s90, %s91
      %p100 = scmp.eq.s32.totalorder %s24, 0
      %p101 = por %p99, %p100
      %p102 = scmp.ne.s32.totalorder %s90, %s91
      %p103 = scmp.eq.s32.totalorder %s25, 1
      %p104 = por %p102, %p103
      %p106 = scmp.ne.s32.totalorder %s91, %s105
      %p107 = scmp.eq.s32.totalorder %s25, 0
      %p108 = por %p106, %p107
      %s109 = ssub.s32 %s27, %s34
      %p110 = scmp.eq.s32.totalorder %s109, 0
      %s112 = sadd.s32 %s111, 1
      %s113 = scalar_select %p110, %s111, %s112
      %p116 = pneg %p110
      %p117 = scmp.eq.s32.totalorder %s19, 1
      %p118 = por %p116, %p117
      %p119 = scmp.ne.s32.totalorder %s111, %s114
      %p120 = scmp.eq.s32.totalorder %s19, 0
      %p121 = por %p119, %p120
      %p122 = scmp.ne.s32.totalorder %s111, %s114
      %p123 = scmp.eq.s32.totalorder %s24, 1
      %p124 = por %p122, %p123
      %p125 = scmp.ne.s32.totalorder %s114, %s115
      %p126 = scmp.eq.s32.totalorder %s24, 0
      %p127 = por %p125, %p126
      %p128 = scmp.ne.s32.totalorder %s114, %s115
      %p129 = scmp.eq.s32.totalorder %s25, 1
      %p130 = por %p128, %p129
      %p132 = scmp.ne.s32.totalorder %s115, %s131
      %p133 = scmp.eq.s32.totalorder %s25, 0
      %p134 = por %p132, %p133
      %s136 = sadd.s32 %s135, 1
      %p139 = scmp.eq.s32.totalorder %s19, 1
      %p140 = scmp.ne.s32.totalorder %s135, %s137
      %p141 = scmp.eq.s32.totalorder %s19, 0
      %p142 = por %p140, %p141
      %p143 = scmp.ne.s32.totalorder %s135, %s137
      %p144 = scmp.eq.s32.totalorder %s24, 1
      %p145 = por %p143, %p144
      %p146 = scmp.ne.s32.totalorder %s137, %s138
      %p147 = scmp.eq.s32.totalorder %s24, 0
      %p148 = por %p146, %p147
      %p149 = scmp.ne.s32.totalorder %s137, %s138
      %p150 = scmp.eq.s32.totalorder %s25, 1
      %p151 = por %p149, %p150
      %p153 = scmp.ne.s32.totalorder %s138, %s152
      %p154 = scmp.eq.s32.totalorder %s25, 0
      %p155 = por %p153, %p154
      %s156 = ssub.s32 %s26, %s38
      %p157 = scmp.eq.s32.totalorder %s156, 0
      %s159 = sadd.s32 %s158, 1
      %s160 = scalar_select %p157, %s158, %s159
      %p163 = pneg %p157
      %p164 = scmp.eq.s32.totalorder %s19, 1
      %p165 = por %p163, %p164
      %p166 = scmp.ne.s32.totalorder %s158, %s161
      %p167 = scmp.eq.s32.totalorder %s19, 0
      %p168 = por %p166, %p167
      %p169 = scmp.ne.s32.totalorder %s158, %s161
      %p170 = scmp.eq.s32.totalorder %s24, 1
      %p171 = por %p169, %p170
      %p172 = scmp.ne.s32.totalorder %s161, %s162
      %p173 = scmp.eq.s32.totalorder %s24, 0
      %p174 = por %p172, %p173
      %p175 = scmp.ne.s32.totalorder %s161, %s162
      %p176 = scmp.eq.s32.totalorder %s25, 1
      %p177 = por %p175, %p176
      %p179 = scmp.ne.s32.totalorder %s162, %s178
      %p180 = scmp.eq.s32.totalorder %s25, 0
      %p181 = por %p179, %p180
      %p182 = scmp.le.s32.totalorder 1, %s19
      %p183 = scmp.lt.s32.totalorder %s19, 3
      %p184 = pnand %p182, %p183
      %p185 = pneg %p184
      // Predicated region
      $region9: #{tpu_custom_call.1} parent=5 // pred_check
        _
      $region10: #{tpu_custom_call.1} parent=5 // pred_check_branch
        %187 = sbr.rel (%p184) target = $region12
      $region11: #{tpu_custom_call.1} parent=5 // pred_region
        %s188 = ssub.s32 %s19, 1
        // Predicated region
        $region13: #{tpu_custom_call.1} parent=11 // pred_check
          %p189 = pneg %p80
        $region14: #{tpu_custom_call.1} parent=11 // pred_check_branch
          %191 = sbr.rel (%p189) target = $region16
        $region15: #{tpu_custom_call.1} parent=11 // pred_region
          _
        $region16: #{tpu_custom_call.1} parent=11 // pred_fallthru
          _
        // Predicated region
        $region17: #{tpu_custom_call.1} parent=11 // pred_check
          %p192 = pneg %p101
        $region18: #{tpu_custom_call.1} parent=11 // pred_check_branch
          %194 = sbr.rel (%p192) target = $region20
        $region19: #{tpu_custom_call.1} parent=11 // pred_region
          _
        $region20: #{tpu_custom_call.1} parent=11 // pred_fallthru
          _
        // Predicated region
        $region21: #{tpu_custom_call.1} parent=11 // pred_check
          %p195 = pneg %p127
        $region22: #{tpu_custom_call.1} parent=11 // pred_check_branch
          %197 = sbr.rel (%p195) target = $region24
        $region23: #{tpu_custom_call.1} parent=11 // pred_region
          %s198 = smul.u32 2, %s29
          %s200 = ssub.s32 256, 256
          %201 = vsyncadd [#allocation8], %s200
          %s202 = smul.addr %s198, 128
          %s203 = scalar_lea.hbm %s3, %s202
          %s204 = sshll.u32 [#allocation7], 4
          %s205 = int_to_ptr.vmem [resolvable:$true] %s204
          %210 = dma.hbm_to_vmem [thread:$0]  %s203, 256, %s205, [#allocation8], 128, 128, 8
        $region24: #{tpu_custom_call.1} parent=11 // pred_fallthru
          _
        // Predicated region
        $region25: #{tpu_custom_call.1} parent=11 // pred_check
          %p211 = pneg %p148
        $region26: #{tpu_custom_call.1} parent=11 // pred_check_branch
          %213 = sbr.rel (%p211) target = $region28
        $region27: #{tpu_custom_call.1} parent=11 // pred_region
          %s215 = ssub.s32 256, 256
          %216 = vsyncadd [#allocation8], %s215
          %s217 = sshll.u32 [#allocation9], 4
          %s218 = int_to_ptr.vmem [resolvable:$true] %s217
          %223 = dma.hbm_to_vmem [thread:$0]  %s4, 256, %s218, [#allocation8], 128, 128, 8
        $region28: #{tpu_custom_call.1} parent=11 // pred_fallthru
          _
      $region12: #{tpu_custom_call.1} parent=5 // pred_fallthru
        _
      %p224 = scmp.lt.s32.totalorder %s19, 2
      // Predicated region
      $region29: #{tpu_custom_call.1} parent=5 // pred_check
        %p225 = pneg %p224
      $region30: #{tpu_custom_call.1} parent=5 // pred_check_branch
        %227 = sbr.rel (%p225) target = $region32
      $region31: #{tpu_custom_call.1} parent=5 // pred_region
        // Predicated region
        $region33: #{tpu_custom_call.1} parent=31 // pred_check
          %p228 = pneg %p53
        $region34: #{tpu_custom_call.1} parent=31 // pred_check_branch
          %230 = sbr.rel (%p228) target = $region36
        $region35: #{tpu_custom_call.1} parent=31 // pred_region
          %s231 = sand.u32 %s43, 1
          %s232 = scalar_lea.sflag [#allocation5], %s231
          %s233 = sand.u32 %s43, 1
          %s234 = smul.addr %s233, 64
          %s235 = scalar_lea.vmem [#allocation4], %s234
          %s236 = smul.u32 2, %s27
          %s238 = ssub.s32 1024, 1024
          %239 = vsyncadd %s232, %s238
          %s240 = smul.addr %s26, 8
          %s241 = sadd.s32 %s236, %s240
          %s242 = smul.addr %s241, 128
          %s243 = scalar_lea.hbm %s0, %s242
          %s244 = sshll.u32 %s235, 4
          %s245 = int_to_ptr.vmem [resolvable:$true] %s244
          %250 = dma.hbm_to_vmem [thread:$0]  %s243, 1024, %s245, %s232, 128, 128, 8
        $region36: #{tpu_custom_call.1} parent=31 // pred_fallthru
          _
      $region32: #{tpu_custom_call.1} parent=5 // pred_fallthru
        _
      %p251 = scmp.le.s32.totalorder 1, %s19
      %p252 = scmp.lt.s32.totalorder %s19, 3
      %p253 = pnand %p251, %p252
      %p254 = pneg %p253
      // Predicated region
      $region37: #{tpu_custom_call.1} parent=5 // pred_check
        _
      $region38: #{tpu_custom_call.1} parent=5 // pred_check_branch
        %256 = sbr.rel (%p253) target = $region40
      $region39: #{tpu_custom_call.1} parent=5 // pred_region
        %s257 = ssub.s32 %s19, 1
        %s258 = sand.u32 %s46, 1
        %s259 = scalar_lea.sflag [#allocation5], %s258
        %s260 = sand.u32 %s46, 1
        %s261 = smul.addr %s260, 64
        %s262 = scalar_lea.vmem [#allocation4], %s261
        // Predicated region
        $region41: #{tpu_custom_call.1} parent=39 // pred_check
          %p263 = pneg %p59
        $region42: #{tpu_custom_call.1} parent=39 // pred_check_branch
          %265 = sbr.rel (%p263) target = $region44
        $region43: #{tpu_custom_call.1} parent=39 // pred_region
          %266 = dma.done %s259, 1024
        $region44: #{tpu_custom_call.1} parent=39 // pred_fallthru
          _
        // Predicated region
        $region45: #{tpu_custom_call.1} parent=39 // pred_check
          %p267 = pneg %p127
        $region46: #{tpu_custom_call.1} parent=39 // pred_check_branch
          %269 = sbr.rel (%p267) target = $region48
        $region47: #{tpu_custom_call.1} parent=39 // pred_region
          %270 = dma.done [#allocation8], 256
        $region48: #{tpu_custom_call.1} parent=39 // pred_fallthru
          _
        // Predicated region
        $region49: #{tpu_custom_call.1} parent=39 // pred_check
          %p271 = pneg %p148
        $region50: #{tpu_custom_call.1} parent=39 // pred_check_branch
          %273 = sbr.rel (%p271) target = $region52
        $region51: #{tpu_custom_call.1} parent=39 // pred_region
          %274 = dma.done [#allocation8], 256
        $region52: #{tpu_custom_call.1} parent=39 // pred_fallthru
          _
        %s275 = sand.u32 %s46, 1
        %s276 = scalar_lea.sflag [#allocation5], %s275
        %s277 = sand.u32 %s46, 1
        %s278 = smul.addr %s277, 64
        %s279 = scalar_lea.vmem [#allocation4], %s278
        %p280 = pneg %p59
        %p281 = pneg %p56
        %p282 = pneg %p80
        %p283 = pneg %p77
        %p284 = pneg %p101
        %p285 = pneg %p98
        %p286 = pneg %p127
        %p287 = pneg %p124
        %p288 = pneg %p148
        %p289 = pneg %p145
        %p290 = pneg %p174
        %p291 = pneg %p171
        %s292 = sand.u32 %s161, 1
        %s293 = scalar_lea.sflag [#allocation6], %s292
        %s294 = sand.u32 %s161, 1
        %s295 = smul.addr %s294, 32
        %s296 = scalar_lea.vmem [#allocation10], %s295
        %s297 = smul.u32 2, %s29
        %s298 = smul.u32 2, %s29
        %p299 = scmp.eq.s32.totalorder %s29, 0
        // Predicated region
        $region53: #{tpu_custom_call.1} parent=39 // pred_check
          %p300 = pneg %p299
        $region54: #{tpu_custom_call.1} parent=39 // pred_check_branch
          %302 = sbr.rel (%p300) target = $region56
        $region55: #{tpu_custom_call.1} parent=39 // pred_region
          %vm303 = vcmask 130048
          %304 = vst.msk [vmem:[#allocation2] sm:$0xff] %vm303, 0.0
          %305 = vst.msk [vmem:[#allocation2 + $0x8] sm:$0xff] %vm303, 0.0
          %306 = vst.msk [vmem:[#allocation2 + $0x10] sm:$0xff] %vm303, 0.0
          %307 = vst.msk [vmem:[#allocation2 + $0x18] sm:$0xff] %vm303, 0.0
        $region56: #{tpu_custom_call.1} parent=39 // pred_fallthru
          _
        %v308 = vld [vmem:[%s262] sm:$0xff]
        %v309 = vld [vmem:[%s262 + $0x8] sm:$0xff]
        %v310 = vld [vmem:[%s262 + $0x10] sm:$0xff]
        %v311 = vld [vmem:[%s262 + $0x18] sm:$0xff]
        %v312 = vld [vmem:[%s262 + $0x20] sm:$0xff]
        %v313 = vld [vmem:[%s262 + $0x28] sm:$0xff]
        %v314 = vld [vmem:[%s262 + $0x30] sm:$0xff]
        %v315 = vld [vmem:[%s262 + $0x38] sm:$0xff]
        %v316 = vld [vmem:[%s1] sm:$0xf]
        %v319 = vunpack.c.l.s4 1966171168
        %v320 = vunpack.c.0.s8 %v319
        %v321 = vlaneseq
        %v322 = vshrl.u32 %v321, 7
        %v323 = vsub.s32 %v320, %v322
        %v324 = vrot.slane %v316, %v323
        %v325 = vcombine.high %v324, %v324
        %v327 = vunpack.c.l.s4 1966171168
        %v328 = vunpack.c.0.s8 %v327
        %v329 = vlaneseq
        %v330 = vshrl.u32 %v329, 7
        %v331 = vsub.s32 %v328, %v330
        %v332 = vrot.slane %v324, %v331
        %v334 = vunpack.c.l.s4 1966171168
        %v335 = vunpack.c.0.s8 %v334
        %v336 = vlaneseq
        %v337 = vshrl.u32 %v336, 7
        %v338 = vsub.s32 %v335, %v337
        %v339 = vrot.slane %v325, %v338
        %v340 = vcombine.high %v332, %v332
        %v341 = vcombine.high %v339, %v339
        %v342 = vlaneseq
        %v343 = vshrl.u32 %v342, 7
        %v344 = vsub.s32 0, %v343
        %v345 = vrot.slane %v332, %v344
        %v346 = vlaneseq
        %v347 = vshrl.u32 %v346, 7
        %v348 = vsub.s32 0, %v347
        %v349 = vrot.slane %v339, %v348
        %v350 = vlaneseq
        %v351 = vshrl.u32 %v350, 7
        %v352 = vsub.s32 0, %v351
        %v353 = vrot.slane %v340, %v352
        %v354 = vlaneseq
        %v355 = vshrl.u32 %v354, 7
        %v356 = vsub.s32 0, %v355
        %v357 = vrot.slane %v341, %v356
        %358 = vset.pattern.permute.xlu0 0
        %359 = vperm.xlu0 %358, %v345
        %v360 = vpop.permute.xlu0 %359
        %362 = vset.pattern.permute.xlu0 0
        %363 = vperm.xlu0 %362, %v349
        %v364 = vpop.permute.xlu0 %363
        %366 = vset.pattern.permute.xlu0 0
        %367 = vperm.xlu0 %366, %v353
        %v368 = vpop.permute.xlu0 %367
        %370 = vset.pattern.permute.xlu0 0
        %371 = vperm.xlu0 %370, %v357
        %v372 = vpop.permute.xlu0 %371
        %v374 = vmul.f32 %v308, %v360
        %v375 = vmul.f32 %v309, %v360
        %v376 = vmul.f32 %v310, %v364
        %v377 = vmul.f32 %v311, %v364
        %v378 = vmul.f32 %v312, %v368
        %v379 = vmul.f32 %v313, %v368
        %v380 = vmul.f32 %v314, %v372
        %v381 = vmul.f32 %v315, %v372
        %vm382 = vcmask 130048
        %v383 = vsel %vm382, %v374, 0.0
        %v384 = vsel %vm382, %v376, 0.0
        %v385 = vadd.f32 %v383, %v384
        %v386 = vsel %vm382, %v378, 0.0
        %v387 = vadd.f32 %v385, %v386
        %v388 = vsel %vm382, %v380, 0.0
        %v389 = vadd.f32 %v387, %v388
        %v390 = vsel %vm382, %v375, 0.0
        %v391 = vsel %vm382, %v377, 0.0
        %v392 = vadd.f32 %v390, %v391
        %v393 = vsel %vm382, %v379, 0.0
        %v394 = vadd.f32 %v392, %v393
        %v395 = vsel %vm382, %v381, 0.0
        %v396 = vadd.f32 %v394, %v395
        %s397 = sld [smem:[#allocation3]]
        %v398 = vstv %s397
        %v399 = vadd.f32 %v389, %v398
        %v400 = vadd.f32 %v396, %v398
        %v401 = vld [vmem:[#allocation2] sm:$0xff]
        %v402 = vld [vmem:[#allocation2 + $0x8] sm:$0xff]
        %v403 = vld [vmem:[#allocation2 + $0x10] sm:$0xff]
        %v404 = vld [vmem:[#allocation2 + $0x18] sm:$0xff]
        %v405 = vld [vmem:[#allocation7] sm:$0xff]
        %v406 = vld [vmem:[#allocation7 + $0x8] sm:$0xff]
        %407 = vxpose.xlu0.b32.start [1/16] %v405, 128
        %408 = vxpose.xlu0.b32.cont [2/16] %v406, 128
        %409 = vxpose.xlu0.b32.cont [3/16] 0.0, 128
        %410 = vxpose.xlu0.b32.cont [4/16] 0.0, 128
        %411 = vxpose.xlu0.b32.cont [5/16] 0.0, 128
        %412 = vxpose.xlu0.b32.cont [6/16] 0.0, 128
        %413 = vxpose.xlu0.b32.cont [7/16] 0.0, 128
        %414 = vxpose.xlu0.b32.cont [8/16] 0.0, 128
        %415 = vxpose.xlu0.b32.cont [9/16] 0.0, 128
        %416 = vxpose.xlu0.b32.cont [10/16] 0.0, 128
        %417 = vxpose.xlu0.b32.cont [11/16] 0.0, 128
        %418 = vxpose.xlu0.b32.cont [12/16] 0.0, 128
        %419 = vxpose.xlu0.b32.cont [13/16] 0.0, 128
        %420 = vxpose.xlu0.b32.cont [14/16] 0.0, 128
        %421 = vxpose.xlu0.b32.cont [15/16] 0.0, 128
        %422 = vxpose.xlu0.b32.end [16/16] 0.0, 128
        %v423 = vpop.trf.xlu0
        %v424 = vpop.trf.xlu0
        %v425 = vpop.trf.xlu0
        %v426 = vpop.trf.xlu0
        %v427 = vpop.trf.xlu0
        %v428 = vpop.trf.xlu0
        %v429 = vpop.trf.xlu0
        %v430 = vpop.trf.xlu0
        %v431 = vpop.trf.xlu0
        %v432 = vpop.trf.xlu0
        %v433 = vpop.trf.xlu0
        %v434 = vpop.trf.xlu0
        %v435 = vpop.trf.xlu0
        %v436 = vpop.trf.xlu0
        %v437 = vpop.trf.xlu0
        %v438 = vpop.trf.xlu0
        %v440 = vsel %vm382, %v423, 0
        %v443 = vsel %vm382, %v424, 0
        %v446 = vsel %vm382, %v425, 0
        %v449 = vsel %vm382, %v426, 0
        %451 = vmatprep.subr.mxu0 0.0
        %452 = vmatpush1.msra.mxu0 0.0
        %453 = vmatprep.subr.mxu0 0.0
        %454 = vmatpush1.msra.mxu0 0.0
        %455 = vmatprep.subr.mxu0 0.0
        %456 = vmatpush1.msra.mxu0 0.0
        %457 = vmatprep.subr.mxu0 0.0
        %458 = vmatpush1.msra.mxu0 0.0
        %459 = vmatprep.subr.mxu0 0.0
        %460 = vmatpush1.msra.mxu0 0.0
        %461 = vmatprep.subr.mxu0 0.0
        %462 = vmatpush1.msra.mxu0 0.0
        %463 = vmatprep.subr.mxu0 0.0
        %464 = vmatpush1.msra.mxu0 0.0
        %465 = vmatprep.subr.mxu0 0.0
        %466 = vmatpush1.msra.mxu0 0.0
        %467 = vmatprep.subr.mxu0 0.0
        %468 = vmatpush1.msra.mxu0 0.0
        %469 = vmatprep.subr.mxu0 0.0
        %470 = vmatpush1.msra.mxu0 0.0
        %471 = vmatprep.subr.mxu0 0.0
        %472 = vmatpush1.msra.mxu0 0.0
        %473 = vmatprep.subr.mxu0 0.0
        %474 = vmatpush1.msra.mxu0 0.0
        %475 = vmatprep.subr.mxu0 0.0
        %476 = vmatpush1.msra.mxu0 0.0
        %477 = vmatprep.subr.mxu0 0.0
        %478 = vmatpush1.msra.mxu0 0.0
        %479 = vmatprep.subr.mxu0 0.0
        %480 = vmatpush1.msra.mxu0 %v400
        %481 = vmatprep.subr.mxu0 0.0
        %482 = vmatpush1.msra.mxu0 %v399
        %483 = vmatprep.subr.mxu0 0.0
        %484 = vmatpush2.msra.mxu0 0.0
        %485 = vmatprep.subr.mxu0 0.0
        %486 = vmatpush2.msra.mxu0 0.0
        %487 = vmatprep.subr.mxu0 0.0
        %488 = vmatpush2.msra.mxu0 0.0
        %489 = vmatprep.subr.mxu0 0.0
        %490 = vmatpush2.msra.mxu0 0.0
        %491 = vmatprep.subr.mxu0 0.0
        %492 = vmatpush2.msra.mxu0 0.0
        %493 = vmatprep.subr.mxu0 0.0
        %494 = vmatpush2.msra.mxu0 0.0
        %495 = vmatprep.subr.mxu0 0.0
        %496 = vmatpush2.msra.mxu0 0.0
        %497 = vmatprep.subr.mxu0 0.0
        %498 = vmatpush2.msra.mxu0 0.0
        %499 = vmatprep.subr.mxu0 0.0
        %500 = vmatpush2.msra.mxu0 0.0
        %501 = vmatprep.subr.mxu0 0.0
        %502 = vmatpush2.msra.mxu0 0.0
        %503 = vmatprep.subr.mxu0 0.0
        %504 = vmatpush2.msra.mxu0 0.0
        %505 = vmatprep.subr.mxu0 0.0
        %506 = vmatpush2.msra.mxu0 0.0
        %507 = vmatprep.subr.mxu0 0.0
        %508 = vmatpush2.msra.mxu0 0.0
        %509 = vmatprep.subr.mxu0 0.0
        %510 = vmatpush2.msra.mxu0 0.0
        %511 = vmatprep.subr.mxu0 0.0
        %512 = vmatpush2.msra.mxu0 0.0
        %513 = vmatprep.subr.mxu0 0.0
        %514 = vmatpush2.msra.mxu0 0.0
        %515 = vmatprep.mubr.f32.mxu0 0.0
        %516 = vmatmul.mubr.f32.gmra.mxu0 %v440
        %v517 = vpop.f32.mrf.mxu0
        %v518 = vadd.f32 0.0, %v517
        %v519 = vpop.f32.mrf.mxu0
        %520 = vmatprep.mubr.f32.mxu0 0.0
        %521 = vmatmul.mubr.f32.gmra.mxu0 %v443
        %v522 = vpop.f32.mrf.mxu0
        %v523 = vadd.f32 0.0, %v522
        %v524 = vpop.f32.mrf.mxu0
        %525 = vmatprep.mubr.f32.mxu0 0.0
        %526 = vmatmul.mubr.f32.gmra.mxu0 %v446
        %v527 = vpop.f32.mrf.mxu0
        %v528 = vadd.f32 0.0, %v527
        %v529 = vpop.f32.mrf.mxu0
        %530 = vmatprep.mubr.f32.mxu0 0.0
        %531 = vmatmul.mubr.f32.gmra.mxu0 %v449
        %v532 = vpop.f32.mrf.mxu0
        %v533 = vadd.f32 0.0, %v532
        %v534 = vpop.f32.mrf.mxu0
        %535 = vdwg.mxu0
        %v536 = vadd.f32 %v401, %v518
        %v537 = vadd.f32 %v402, %v523
        %v538 = vadd.f32 %v403, %v528
        %v539 = vadd.f32 %v404, %v533
        %540 = vst.msk [vmem:[#allocation2] sm:$0xff] %vm382, %v536
        %541 = vst.msk [vmem:[#allocation2 + $0x8] sm:$0xff] %vm382, %v537
        %542 = vst.msk [vmem:[#allocation2 + $0x10] sm:$0xff] %vm382, %v538
        %543 = vst.msk [vmem:[#allocation2 + $0x18] sm:$0xff] %vm382, %v539
        // Predicated region
        $region57: #{tpu_custom_call.1} parent=39 // pred_check
          %p544 = pneg %p299
        $region58: #{tpu_custom_call.1} parent=39 // pred_check_branch
          %546 = sbr.rel (%p544) target = $region60
        $region59: #{tpu_custom_call.1} parent=39 // pred_region
          %v547 = vld [vmem:[#allocation2] sm:$0xff]
          %v548 = vld [vmem:[#allocation2 + $0x8] sm:$0xff]
          %v549 = vld [vmem:[#allocation2 + $0x10] sm:$0xff]
          %v550 = vld [vmem:[#allocation2 + $0x18] sm:$0xff]
          %v551 = vld [vmem:[#allocation9] sm:$0xff]
          %v552 = vld [vmem:[#allocation9 + $0x8] sm:$0xff]
          %v554 = vsel %vm382, %v547, 0
          %v557 = vsel %vm382, %v548, 0
          %v560 = vsel %vm382, %v549, 0
          %v563 = vsel %vm382, %v550, 0
          %565 = vmatprep.subr.mxu0 0.0
          %566 = vmatpush1.msra.mxu0 0.0
          %567 = vmatprep.subr.mxu0 0.0
          %568 = vmatpush1.msra.mxu0 0.0
          %569 = vmatprep.subr.mxu0 0.0
          %570 = vmatpush1.msra.mxu0 0.0
          %571 = vmatprep.subr.mxu0 0.0
          %572 = vmatpush1.msra.mxu0 0.0
          %573 = vmatprep.subr.mxu0 0.0
          %574 = vmatpush1.msra.mxu0 0.0
          %575 = vmatprep.subr.mxu0 0.0
          %576 = vmatpush1.msra.mxu0 0.0
          %577 = vmatprep.subr.mxu0 0.0
          %578 = vmatpush1.msra.mxu0 0.0
          %579 = vmatprep.subr.mxu0 0.0
          %580 = vmatpush1.msra.mxu0 0.0
          %581 = vmatprep.subr.mxu0 0.0
          %582 = vmatpush1.msra.mxu0 0.0
          %583 = vmatprep.subr.mxu0 0.0
          %584 = vmatpush1.msra.mxu0 0.0
          %585 = vmatprep.subr.mxu0 0.0
          %586 = vmatpush1.msra.mxu0 0.0
          %587 = vmatprep.subr.mxu0 0.0
          %588 = vmatpush1.msra.mxu0 0.0
          %589 = vmatprep.subr.mxu0 0.0
          %590 = vmatpush1.msra.mxu0 0.0
          %591 = vmatprep.subr.mxu0 0.0
          %592 = vmatpush1.msra.mxu0 0.0
          %593 = vmatprep.subr.mxu0 0.0
          %594 = vmatpush1.msra.mxu0 %v552
          %595 = vmatprep.subr.mxu0 0.0
          %596 = vmatpush1.msra.mxu0 %v551
          %597 = vmatprep.subr.mxu0 0.0
          %598 = vmatpush2.msra.mxu0 0.0
          %599 = vmatprep.subr.mxu0 0.0
          %600 = vmatpush2.msra.mxu0 0.0
          %601 = vmatprep.subr.mxu0 0.0
          %602 = vmatpush2.msra.mxu0 0.0
          %603 = vmatprep.subr.mxu0 0.0
          %604 = vmatpush2.msra.mxu0 0.0
          %605 = vmatprep.subr.mxu0 0.0
          %606 = vmatpush2.msra.mxu0 0.0
          %607 = vmatprep.subr.mxu0 0.0
          %608 = vmatpush2.msra.mxu0 0.0
          %609 = vmatprep.subr.mxu0 0.0
          %610 = vmatpush2.msra.mxu0 0.0
          %611 = vmatprep.subr.mxu0 0.0
          %612 = vmatpush2.msra.mxu0 0.0
          %613 = vmatprep.subr.mxu0 0.0
          %614 = vmatpush2.msra.mxu0 0.0
          %615 = vmatprep.subr.mxu0 0.0
          %616 = vmatpush2.msra.mxu0 0.0
          %617 = vmatprep.subr.mxu0 0.0
          %618 = vmatpush2.msra.mxu0 0.0
          %619 = vmatprep.subr.mxu0 0.0
          %620 = vmatpush2.msra.mxu0 0.0
          %621 = vmatprep.subr.mxu0 0.0
          %622 = vmatpush2.msra.mxu0 0.0
          %623 = vmatprep.subr.mxu0 0.0
          %624 = vmatpush2.msra.mxu0 0.0
          %625 = vmatprep.subr.mxu0 0.0
          %626 = vmatpush2.msra.mxu0 0.0
          %627 = vmatprep.subr.mxu0 0.0
          %628 = vmatpush2.msra.mxu0 0.0
          %629 = vmatprep.mubr.f32.mxu0 0.0
          %630 = vmatmul.mubr.f32.gmra.mxu0 %v554
          %v631 = vpop.f32.mrf.mxu0
          %v632 = vadd.f32 0.0, %v631
          %v633 = vpop.f32.mrf.mxu0
          %634 = vmatprep.mubr.f32.mxu0 0.0
          %635 = vmatmul.mubr.f32.gmra.mxu0 %v557
          %v636 = vpop.f32.mrf.mxu0
          %v637 = vadd.f32 0.0, %v636
          %v638 = vpop.f32.mrf.mxu0
          %639 = vmatprep.mubr.f32.mxu0 0.0
          %640 = vmatmul.mubr.f32.gmra.mxu0 %v560
          %v641 = vpop.f32.mrf.mxu0
          %v642 = vadd.f32 0.0, %v641
          %v643 = vpop.f32.mrf.mxu0
          %644 = vmatprep.mubr.f32.mxu0 0.0
          %645 = vmatmul.mubr.f32.gmra.mxu0 %v563
          %v646 = vpop.f32.mrf.mxu0
          %v647 = vadd.f32 0.0, %v646
          %v648 = vpop.f32.mrf.mxu0
          %649 = vdwg.mxu0
          %vm650 = vcmask 261120
          %651 = vst.msk [vmem:[%s296] sm:$0xff] %vm650, %v632
          %652 = vst.msk [vmem:[%s296 + $0x8] sm:$0xff] %vm650, %v637
          %653 = vst.msk [vmem:[%s296 + $0x10] sm:$0xff] %vm650, %v642
          %654 = vst.msk [vmem:[%s296 + $0x18] sm:$0xff] %vm650, %v647
        $region60: #{tpu_custom_call.1} parent=39 // pred_fallthru
          _
        %s655 = sand.u32 %s161, 1
        %s656 = scalar_lea.sflag [#allocation6], %s655
        %s657 = sand.u32 %s161, 1
        %s658 = smul.addr %s657, 32
        %s659 = scalar_lea.vmem [#allocation10], %s658
        // Predicated region
        $region61: #{tpu_custom_call.1} parent=39 // pred_check
          %p660 = pneg %p171
        $region62: #{tpu_custom_call.1} parent=39 // pred_check_branch
          %662 = sbr.rel (%p660) target = $region64
        $region63: #{tpu_custom_call.1} parent=39 // pred_region
          %s664 = ssub.s32 512, 512
          %665 = vsyncadd %s656, %s664
          %s666 = smul.addr %s28, 4
          %s667 = smul.addr %s666, 128
          %s668 = scalar_lea.hbm %s5, %s667
          %s669 = sshll.u32 %s659, 4
          %s670 = int_to_ptr.vmem [resolvable:$true] %s669
          %675 = dma.vmem_to_hbm [thread:$0]  %s670, 512, %s668, %s656, 128, 128, 8
        $region64: #{tpu_custom_call.1} parent=39 // pred_fallthru
          _
      $region40: #{tpu_custom_call.1} parent=5 // pred_fallthru
        _
      %p676 = scmp.le.s32.totalorder 2, %s19
      // Predicated region
      $region65: #{tpu_custom_call.1} parent=5 // pred_check
        %p677 = pneg %p676
      $region66: #{tpu_custom_call.1} parent=5 // pred_check_branch
        %679 = sbr.rel (%p677) target = $region68
      $region67: #{tpu_custom_call.1} parent=5 // pred_region
        %s680 = ssub.s32 %s19, 2
        // Predicated region
        $region69: #{tpu_custom_call.1} parent=67 // pred_check
          %p681 = pneg %p177
        $region70: #{tpu_custom_call.1} parent=67 // pred_check_branch
          %683 = sbr.rel (%p681) target = $region72
        $region71: #{tpu_custom_call.1} parent=67 // pred_region
          %s684 = sand.u32 %s162, 1
          %s685 = scalar_lea.sflag [#allocation6], %s684
          %s686 = sand.u32 %s162, 1
          %s687 = smul.addr %s686, 32
          %s688 = scalar_lea.vmem [#allocation10], %s687
          %689 = dma.done %s685, 512
        $region72: #{tpu_custom_call.1} parent=67 // pred_fallthru
          _
      $region68: #{tpu_custom_call.1} parent=5 // pred_fallthru
        _
    $region6: #{tpu_custom_call.1} parent=1 // loop_footer
      %s23 = sadd.s32 1, %s19
    $region7: #{tpu_custom_call.1} parent=1 // loop_footer_branch
      %18 = sbr.rel target = $region3
    $region8: #{tpu_custom_call.1} parent=1 // loop_exit
      _
    %690 = vsyncpa [#allocation5], 1
    %s691 = scalar_lea.sflag [#allocation5], 1
    %692 = vsyncpa %s691, 1
    %693 = vsyncpa [#allocation8], 1
    %694 = vsyncpa [#allocation6], 1
    %s695 = scalar_lea.sflag [#allocation6], 1
    %696 = vsyncpa %s695, 1

</llo_original>
